<compile_context>
chip_gen: v7x
topology: tpu7x:2x2x1
jax: 0.10.0
libtpu: 0.0.40
codegen_flags: <defaults>
</compile_context>

<pallas_src>
from functools import partial

import numpy as np
import jax
import jax.numpy as jnp
from jax.experimental import pallas as pl
from jax.experimental.pallas import tpu as pltpu


def _prediction_kernel(pv_ref, vfe_ref, rfT_ref, now_ref, his_ref,
                       w1_ref, bu_ref, comp_ref, out_ref):
    # ---- batch-invariant per-field work (once per f-tile) -------------------
    # mlp_his hidden layer: bf16 MXU dot, f32 accumulate.
    h = jnp.dot(w1_ref[...], rfT_ref[...],
                preferred_element_type=jnp.float32)            # (D2, TF)
    h = h + bu_ref[:, 0:1]                                     # + b1
    h = jnp.where(h > 0, h, 0.01 * h)                          # LeakyReLU(0.01)
    # fc_field folded through mlp_his[2]: VPU multiply + sublane (XLU) reduce.
    vm = jnp.sum(bu_ref[:, 1:2] * h, axis=0, keepdims=True)    # (1, TF) = (wfc@W2)@h

    # Packed parameter-only vectors (precomputed in prepare_params).
    v_base = pv_ref[0:1, :]      # wfc @ projection_layer(field_embedding.weight)
    a_vbase = pv_ref[1:2, :]     # alpha * v_base
    alpha = pv_ref[2:3, :]       # alpha_fields
    a_c2 = pv_ref[3:4, :]        # alpha * (wfc @ b2 of mlp_his)

    # ---- per-sample elementwise combine (all B rows at once on sublanes) ----
    now = now_ref[...].astype(jnp.float32)                     # (B, TF)
    his = his_ref[...].astype(jnp.float32)                     # (B, TF)
    beta = jnp.maximum(now, his)                               # union mask

    out_ref[...] = (v_base - beta * a_vbase
                    + now * (alpha * vfe_ref[...])
                    + his * (alpha * vm + a_c2)
                    + comp_ref[...])                           # (B, 1) broadcast


def prepare_params(field_table, wp, bp, w1, b1, w2, b2, wfc, bfc,
                   wfcc, bfcc, company_table, theta, alpha):
    """One-time parameter preprocessing: all parameter-only algebra hoisted here."""
    f32 = jnp.float32
    wfc_row = wfc.reshape(-1).astype(f32)                                  # (D,)
    alpha_f = alpha.reshape(-1).astype(f32)                                # (F,)

    # v_base[f] = wfc @ (Wp @ ft[f] + bp)   -- batch- and call-invariant.
    v_base = field_table.astype(f32) @ (wfc_row @ wp.astype(f32)) \
        + jnp.dot(wfc_row, bp.astype(f32))                                 # (F,)
    c2 = jnp.dot(wfc_row, b2.astype(f32))                                  # wfc @ b2 (scalar)
    pv = jnp.stack([v_base, alpha_f * v_base, alpha_f, alpha_f * c2], 0)   # (4, F)

    u2 = wfc_row @ w2.astype(f32)                                          # (D2,) = wfc @ W2
    bu = jnp.stack([b1.reshape(-1).astype(f32), u2], axis=1)               # (D2, 2): [b1 | u2]

    return dict(
        pv=pv,                                                             # (4, F)
        w1=w1.astype(jnp.bfloat16),                                        # (D2, D) mlp_his hidden
        bu=bu,                                                             # (D2, 2)
        wfc_row=wfc_row,                                                   # (D,)
        bfc=jnp.asarray(bfc, f32),
        wfcc_row=wfcc.reshape(-1).astype(f32),                             # (D,)
        bfcc=jnp.asarray(bfcc, f32),
        company_table=company_table.astype(f32),                           # (Nc, D)
        theta=theta.astype(f32),                                           # (Nc, 1)
    )


@partial(jax.jit, static_argnames=("tile_f",))
def prediction_layer_forward(params, company_emb, field_emb, raw_field_embed,
                             now_mask, his_mask, com_id, *, tile_f=None):
    f32 = jnp.float32
    F = params["pv"].shape[1]
    D2, D = params["w1"].shape
    B = now_mask.shape[0]
    if tile_f is None:
        tile_f = F          # single grid step by default (kernel is overhead-bound)
    assert F % tile_f == 0

    # Company branch + per-call GEMV glue (tiny, fused by XLA; dropout = eval identity).
    th = params["theta"][com_id]                                            # (B, 1)
    company_mem_stat = (1.0 - th) * company_emb + th * params["company_table"][com_id]
    company_out = company_mem_stat @ params["wfcc_row"] + params["bfcc"]    # (B,)
    comp = (company_out + params["bfc"]).reshape(B, 1).astype(f32)          # fc_field bias folded in

    # fc_field fold of field_emb: 256x32 GEMV in XLA (fuses with glue above).
    v_fe = (field_emb.astype(f32) @ params["wfc_row"]).reshape(1, F)        # (1, F)

    # mlp_his input, lane-dense (D, F), bf16 (cast fused with the transpose).
    rfT = raw_field_embed.astype(jnp.bfloat16).T                            # (D, F)

    fmap = lambda f: (0, f)      # tiled along the field axis
    fixed = lambda f: (0, 0)     # whole array, fetched once

    return pl.pallas_call(
        _prediction_kernel,
        out_shape=jax.ShapeDtypeStruct((B, F), f32),
        grid=(F // tile_f,),
        in_specs=[
            pl.BlockSpec((4, tile_f), fmap),     # packed param vectors
            pl.BlockSpec((1, tile_f), fmap),     # v_fe (per-call)
            pl.BlockSpec((D, tile_f), fmap),     # raw_field_embed^T (bf16)
            pl.BlockSpec((B, tile_f), fmap),     # now mask (all B rows)
            pl.BlockSpec((B, tile_f), fmap),     # his mask (all B rows)
            pl.BlockSpec((D2, D), fixed),        # W1 (mlp_his hidden, bf16)
            pl.BlockSpec((D2, 2), fixed),        # [b1 | wfc@W2]
            pl.BlockSpec((B, 1), fixed),         # company scalar + fc_field bias
        ],
        out_specs=pl.BlockSpec((B, tile_f), fmap),
        compiler_params=pltpu.CompilerParams(
            dimension_semantics=("parallel",)),
    )(params["pv"], v_fe, rfT, now_mask, his_mask,
      params["w1"], params["bu"], comp)


def reference_forward(field_table, raw_field_embed, field_emb, alpha,
                      now_mask, his_mask, wp, bp, w1, b1, w2, b2,
                      wfc, bfc, company_out):
    base = field_table @ wp.T + bp                      # (F, D)
    h = raw_field_embed @ w1.T + b1
    h = jnp.where(h > 0, h, 0.01 * h)
    m = h @ w2.T + b2                                   # (F, D)
    beta = jnp.maximum(now_mask, his_mask)              # (B, F)
    a = alpha[None, :, None]                            # (1, F, 1)
    embed = ((1.0 - beta[:, :, None] * a) * base[None]
             + now_mask[:, :, None] * a * field_emb[None]
             + his_mask[:, :, None] * a * m[None])      # (B, F, D)
    fields = embed @ wfc[0] + bfc                       # (B, F)
    return fields + company_out[:, None]


if __name__ == "__main__":
    # Small shapes consistent with the module (dim_field=D, n_fields=F, ...)
    B, F, D, D2 = 2, 256, 32, 16
    N_COMPANY = 32

    key = jax.random.PRNGKey(0)
    ks = jax.random.split(key, 16)

    # ---- module parameters (deterministic synthetic init) ----
    company_table = jax.random.normal(ks[0], (N_COMPANY, D), jnp.float32)   # nn.Embedding
    field_table = jax.random.normal(ks[1], (F, D), jnp.float32)             # nn.Embedding
    wp = jax.random.normal(ks[2], (D, D), jnp.float32) * (1.0 / np.sqrt(D)) # projection_layer
    bp = jax.random.normal(ks[3], (D,), jnp.float32) * 0.1
    theta = jax.random.uniform(ks[4], (N_COMPANY, 1), jnp.float32)          # nn.Parameter rand
    alpha = jax.random.uniform(ks[5], (F,), jnp.float32)                    # alpha_fields
    wfc = jax.random.normal(ks[6], (1, D), jnp.float32) * (1.0 / np.sqrt(D))   # fc_field
    bfc = jnp.float32(0.05)
    wfcc = jax.random.normal(ks[7], (1, D), jnp.float32) * (1.0 / np.sqrt(D))  # fc_company
    bfcc = jnp.float32(-0.02)
    w1 = jax.random.normal(ks[8], (D2, D), jnp.float32) * (1.0 / np.sqrt(D))   # mlp_his[0]
    b1 = jax.random.normal(ks[9], (D2,), jnp.float32) * 0.1
    b2 = jax.random.normal(ks[11], (D,), jnp.float32) * 0.1
    w2 = jax.random.normal(ks[10], (D, D2), jnp.float32) * (1.0 / np.sqrt(D2)) # mlp_his[2]

    # ---- forward inputs ----
    company_emb = jax.random.normal(ks[12], (B, D), jnp.float32)
    field_emb = jax.random.normal(ks[13], (F, D), jnp.float32)
    raw_field_embed = jax.random.normal(ks[14], (F, D), jnp.float32)
    com_id = jnp.array([3, 7], dtype=jnp.int32)
    nodes = [([10, 130, 200], [5, 10, 77]),       # (his_node, now_node) sample 0
             ([2, 44], [44, 99, 250, 251])]       # sample 1 (44 in both -> overlap case)

    now_mask = np.zeros((B, F), np.float32)
    his_mask = np.zeros((B, F), np.float32)
    for i, (his_n, now_n) in enumerate(nodes):
        now_mask[i, now_n] = 1.0
        his_mask[i, his_n] = 1.0
    now_mask = jnp.asarray(now_mask)
    his_mask = jnp.asarray(his_mask)

    # ---- one-time parameter preprocessing (outside the hot path) ----
    params = prepare_params(field_table, wp, bp, w1, b1, w2, b2, wfc, bfc,
                            wfcc, bfcc, company_table, theta, alpha)

    out = prediction_layer_forward(params, company_emb, field_emb, raw_field_embed,
                                   now_mask, his_mask, com_id)
    out = jax.block_until_ready(out)

    # ---- reference (plain JAX, all f32) ----
    th = theta[com_id]                                               # (B, 1)
    company_mem_stat = (1.0 - th) * company_emb + th * company_table[com_id]
    company_out = company_mem_stat @ wfcc[0] + bfcc                  # (B,)
    ref = reference_forward(field_table, raw_field_embed, field_emb, alpha,
                            now_mask, his_mask, wp, bp, w1, b1, w2, b2,
                            wfc, bfc, company_out)
    np.testing.assert_allclose(np.asarray(out), np.asarray(ref), rtol=2e-2, atol=2e-2)

    assert out.shape == (B, F)
    print("KERNEL_OK")
</pallas_src>

<mosaic_0001>
module attributes {stable_mosaic.version = 11 : i64} {
  func.func @_prediction_kernel(%arg0: i32, %arg1: memref<4x256xf32, #tpu.memory_space<vmem>>, %arg2: memref<1x256xf32, #tpu.memory_space<vmem>>, %arg3: memref<32x256xbf16, #tpu.memory_space<vmem>>, %arg4: memref<2x256xf32, #tpu.memory_space<vmem>>, %arg5: memref<2x256xf32, #tpu.memory_space<vmem>>, %arg6: memref<16x32xbf16, #tpu.memory_space<vmem>>, %arg7: memref<16x2xf32, #tpu.memory_space<vmem>>, %arg8: memref<2x1xf32, #tpu.memory_space<vmem>>, %arg9: memref<2x256xf32, #tpu.memory_space<vmem>>) attributes {dimension_semantics = [#tpu.dimension_semantics<parallel>], iteration_bounds = array<i64: 1>, scalar_prefetch = 0 : i64, scratch_operands = 0 : i64, tpu.core_type = #tpu.core_type<tc>, window_params = [{transform_indices = @transform_0, window_bounds = array<i64: 4, 256>}, {transform_indices = @transform_1, window_bounds = array<i64: 1, 256>}, {transform_indices = @transform_2, window_bounds = array<i64: 32, 256>}, {transform_indices = @transform_3, window_bounds = array<i64: 2, 256>}, {transform_indices = @transform_4, window_bounds = array<i64: 2, 256>}, {pipeline_mode = #tpu.pipeline_mode<synchronous>, transform_indices = @transform_5, window_bounds = array<i64: 16, 32>}, {pipeline_mode = #tpu.pipeline_mode<synchronous>, transform_indices = @transform_6, window_bounds = array<i64: 16, 2>}, {pipeline_mode = #tpu.pipeline_mode<synchronous>, transform_indices = @transform_7, window_bounds = array<i64: 2, 1>}, {transform_indices = @transform_8, window_bounds = array<i64: 2, 256>}]} {
    %c0 = arith.constant 0 : index
    %c0_0 = arith.constant 0 : index
    %0 = vector.load %arg6[%c0, %c0_0] : memref<16x32xbf16, #tpu.memory_space<vmem>>, vector<16x32xbf16>
    %c0_1 = arith.constant 0 : index
    %c0_2 = arith.constant 0 : index
    %1 = vector.load %arg3[%c0_1, %c0_2] : memref<32x256xbf16, #tpu.memory_space<vmem>>, vector<32x256xbf16>
    %cst = arith.constant dense<0.000000e+00> : vector<16x256xf32>
    %2 = tpu.matmul %0, %1, %cst {dimension_numbers = #tpu.dot_dimension_numbers<[1], [0], [0], [1], [0, 0, 1, 1], [], []>} : vector<16x32xbf16>, vector<32x256xbf16>, vector<16x256xf32> -> vector<16x256xf32>
    %c0_3 = arith.constant 0 : index
    %c0_4 = arith.constant 0 : index
    %3 = vector.load %arg7[%c0_3, %c0_4] : memref<16x2xf32, #tpu.memory_space<vmem>>, vector<16x1xf32>
    %4 = vector.broadcast %3 : vector<16x1xf32> to vector<16x256xf32>
    %5 = arith.addf %2, %4 : vector<16x256xf32>
    %cst_5 = arith.constant 0.000000e+00 : f32
    %6 = vector.broadcast %cst_5 : f32 to vector<16x256xf32>
    %7 = arith.cmpf ogt, %5, %6 : vector<16x256xf32>
    %cst_6 = arith.constant 0.00999999977 : f32
    %8 = vector.broadcast %cst_6 : f32 to vector<16x256xf32>
    %9 = arith.mulf %8, %5 : vector<16x256xf32>
    %10 = arith.select %7, %5, %9 : vector<16x256xi1>, vector<16x256xf32>
    %c0_7 = arith.constant 0 : index
    %c1 = arith.constant 1 : index
    %11 = vector.load %arg7[%c0_7, %c1] : memref<16x2xf32, #tpu.memory_space<vmem>>, vector<16x1xf32>
    %12 = vector.broadcast %11 : vector<16x1xf32> to vector<16x256xf32>
    %13 = arith.mulf %12, %10 : vector<16x256xf32>
    %cst_8 = arith.constant dense<0.000000e+00> : vector<256xf32>
    %14 = vector.multi_reduction <add>, %13, %cst_8 [0] : vector<16x256xf32> to vector<256xf32>
    %15 = vector.shape_cast %14 : vector<256xf32> to vector<1x256xf32>
    %c0_9 = arith.constant 0 : index
    %c0_10 = arith.constant 0 : index
    %16 = vector.load %arg1[%c0_9, %c0_10] : memref<4x256xf32, #tpu.memory_space<vmem>>, vector<1x256xf32>
    %c1_11 = arith.constant 1 : index
    %c0_12 = arith.constant 0 : index
    %17 = vector.load %arg1[%c1_11, %c0_12] : memref<4x256xf32, #tpu.memory_space<vmem>>, vector<1x256xf32>
    %c2 = arith.constant 2 : index
    %c0_13 = arith.constant 0 : index
    %18 = vector.load %arg1[%c2, %c0_13] : memref<4x256xf32, #tpu.memory_space<vmem>>, vector<1x256xf32>
    %c3 = arith.constant 3 : index
    %c0_14 = arith.constant 0 : index
    %19 = vector.load %arg1[%c3, %c0_14] : memref<4x256xf32, #tpu.memory_space<vmem>>, vector<1x256xf32>
    %c0_15 = arith.constant 0 : index
    %c0_16 = arith.constant 0 : index
    %20 = vector.load %arg4[%c0_15, %c0_16] : memref<2x256xf32, #tpu.memory_space<vmem>>, vector<2x256xf32>
    %c0_17 = arith.constant 0 : index
    %c0_18 = arith.constant 0 : index
    %21 = vector.load %arg5[%c0_17, %c0_18] : memref<2x256xf32, #tpu.memory_space<vmem>>, vector<2x256xf32>
    %22 = arith.maximumf %20, %21 : vector<2x256xf32>
    %23 = vector.broadcast %17 : vector<1x256xf32> to vector<2x256xf32>
    %24 = arith.mulf %22, %23 : vector<2x256xf32>
    %25 = vector.broadcast %16 : vector<1x256xf32> to vector<2x256xf32>
    %26 = arith.subf %25, %24 : vector<2x256xf32>
    %c0_19 = arith.constant 0 : index
    %c0_20 = arith.constant 0 : index
    %27 = vector.load %arg2[%c0_19, %c0_20] : memref<1x256xf32, #tpu.memory_space<vmem>>, vector<1x256xf32>
    %28 = arith.mulf %18, %27 : vector<1x256xf32>
    %29 = vector.broadcast %28 : vector<1x256xf32> to vector<2x256xf32>
    %30 = arith.mulf %20, %29 : vector<2x256xf32>
    %31 = arith.addf %26, %30 : vector<2x256xf32>
    %32 = arith.mulf %18, %15 : vector<1x256xf32>
    %33 = arith.addf %32, %19 : vector<1x256xf32>
    %34 = vector.broadcast %33 : vector<1x256xf32> to vector<2x256xf32>
    %35 = arith.mulf %21, %34 : vector<2x256xf32>
    %36 = arith.addf %31, %35 : vector<2x256xf32>
    %c0_21 = arith.constant 0 : index
    %c0_22 = arith.constant 0 : index
    %37 = vector.load %arg8[%c0_21, %c0_22] : memref<2x1xf32, #tpu.memory_space<vmem>>, vector<2x1xf32>
    %38 = vector.broadcast %37 : vector<2x1xf32> to vector<2x256xf32>
    %39 = arith.addf %36, %38 : vector<2x256xf32>
    %c0_23 = arith.constant 0 : index
    %c0_24 = arith.constant 0 : index
    %40 = vector.load %arg9[%c0_23, %c0_24] : memref<2x256xf32, #tpu.memory_space<vmem>>, vector<2x256xf32>
    tpu.vector_store %arg9[%c0_23, %c0_24], %39 {strides = array<i32>} : memref<2x256xf32, #tpu.memory_space<vmem>>, vector<2x256xf32>,
    return
  }
  func.func @transform_0(%arg0: i32) -> (i32, i32) {
    %c0_i32 = arith.constant 0 : i32
    %c0_i32_0 = arith.constant 0 : i32
    return %c0_i32, %arg0 : i32, i32
  }
  func.func @transform_1(%arg0: i32) -> (i32, i32) {
    %c0_i32 = arith.constant 0 : i32
    %c0_i32_0 = arith.constant 0 : i32
    return %c0_i32, %arg0 : i32, i32
  }
  func.func @transform_2(%arg0: i32) -> (i32, i32) {
    %c0_i32 = arith.constant 0 : i32
    %c0_i32_0 = arith.constant 0 : i32
    return %c0_i32, %arg0 : i32, i32
  }
  func.func @transform_3(%arg0: i32) -> (i32, i32) {
    %c0_i32 = arith.constant 0 : i32
    %c0_i32_0 = arith.constant 0 : i32
    return %c0_i32, %arg0 : i32, i32
  }
  func.func @transform_4(%arg0: i32) -> (i32, i32) {
    %c0_i32 = arith.constant 0 : i32
    %c0_i32_0 = arith.constant 0 : i32
    return %c0_i32, %arg0 : i32, i32
  }
  func.func @transform_5(%arg0: i32) -> (i32, i32) {
    %c0_i32 = arith.constant 0 : i32
    %c0_i32_0 = arith.constant 0 : i32
    %c0_i32_1 = arith.constant 0 : i32
    return %c0_i32, %c0_i32_0 : i32, i32
  }
  func.func @transform_6(%arg0: i32) -> (i32, i32) {
    %c0_i32 = arith.constant 0 : i32
    %c0_i32_0 = arith.constant 0 : i32
    %c0_i32_1 = arith.constant 0 : i32
    return %c0_i32, %c0_i32_0 : i32, i32
  }
  func.func @transform_7(%arg0: i32) -> (i32, i32) {
    %c0_i32 = arith.constant 0 : i32
    %c0_i32_0 = arith.constant 0 : i32
    %c0_i32_1 = arith.constant 0 : i32
    return %c0_i32, %c0_i32_0 : i32, i32
  }
  func.func @transform_8(%arg0: i32) -> (i32, i32) {
    %c0_i32 = arith.constant 0 : i32
    %c0_i32_0 = arith.constant 0 : i32
    return %c0_i32, %arg0 : i32, i32
  }
}

</mosaic_0001>

<llo_original>
// kernel: prediction_layer_forward.1
$region0: #{prediction_layer_forward.1}
  #allocation0 [shape = 'u32[]', space=smem, size = 0x4, offset = 0x4, fixed_abs, tag = 'smem constant byte address 0x4 - core index']
  #allocation1 [shape = 'u32[144,128]{1,0:T(1,128)}', space=vmem, size = 0x12000, scoped, tag = 'internal scratch']
  %s0 = inlined_call_operand.vmem [shape: f32[4,256], index: 0, kind: input, shape index: {}]
  %s1 = inlined_call_operand.vmem [shape: f32[1,256], index: 1, kind: input, shape index: {}]
  %s2 = inlined_call_operand.vmem [shape: bf16[32,256], index: 2, kind: input, shape index: {}]
  %s3 = inlined_call_operand.vmem [shape: f32[2,256], index: 3, kind: input, shape index: {}]
  %s4 = inlined_call_operand.vmem [shape: f32[2,256], index: 4, kind: input, shape index: {}]
  %s5 = inlined_call_operand.vmem [shape: bf16[16,32], index: 5, kind: input, shape index: {}]
  %s6 = inlined_call_operand.vmem [shape: f32[16,2], index: 6, kind: input, shape index: {}]
  %s7 = inlined_call_operand.vmem [shape: f32[2,1], index: 7, kind: input, shape index: {}]
  %s8 = inlined_call_operand.hbm [shape: f32[2,256], index: 8, kind: output, shape index: {}]
  %s9 = sld [smem:[#allocation0]]
  $region42: #{prediction_layer_forward.1} parent=0
    _
  %s11 = ssub.s32 1, %s9
  %s12 = scalar_select 0, %s11, %s9
  $region1: #{prediction_layer_forward.1} parent=0
    #allocation2 [shape = 'u8[2048]{0}', space=vmem, size = 0x800, scoped, tag = 'output window, operand 0, single buffered']
    #allocation3 [shape = 's32[1]{0}', space=sflag, size = 0x4, scoped, tag = 'scoped memory for prediction_layer_forward.1']
    %13 = vsyncpa [#allocation3], 0
    // Predicated region
    $region2: #{prediction_layer_forward.1} parent=1 // pred_check
      _
    $region3: #{prediction_layer_forward.1} parent=1 // pred_check_branch
      %15 = sbr.rel (0) target = $region5
    $region4: #{prediction_layer_forward.1} parent=1 // pred_region
      _
    $region5: #{prediction_layer_forward.1} parent=1 // pred_fallthru
      _
    // Predicated region
    $region6: #{prediction_layer_forward.1} parent=1 // pred_check
      _
    $region7: #{prediction_layer_forward.1} parent=1 // pred_check_branch
      %17 = sbr.rel (0) target = $region9
    $region8: #{prediction_layer_forward.1} parent=1 // pred_region
      _
    $region9: #{prediction_layer_forward.1} parent=1 // pred_fallthru
      _
    // Predicated region
    $region10: #{prediction_layer_forward.1} parent=1 // pred_check
      _
    $region11: #{prediction_layer_forward.1} parent=1 // pred_check_branch
      %19 = sbr.rel (0) target = $region13
    $region12: #{prediction_layer_forward.1} parent=1 // pred_region
      _
    $region13: #{prediction_layer_forward.1} parent=1 // pred_fallthru
      _
    // Predicated region
    $region14: #{prediction_layer_forward.1} parent=1 // pred_check
      _
    $region15: #{prediction_layer_forward.1} parent=1 // pred_check_branch
      %21 = sbr.rel (0) target = $region17
    $region16: #{prediction_layer_forward.1} parent=1 // pred_region
      _
    $region17: #{prediction_layer_forward.1} parent=1 // pred_fallthru
      _
    // Predicated region
    $region18: #{prediction_layer_forward.1} parent=1 // pred_check
      _
    $region19: #{prediction_layer_forward.1} parent=1 // pred_check_branch
      %23 = sbr.rel (0) target = $region21
    $region20: #{prediction_layer_forward.1} parent=1 // pred_region
      _
    $region21: #{prediction_layer_forward.1} parent=1 // pred_fallthru
      _
    // Predicated region
    $region22: #{prediction_layer_forward.1} parent=1 // pred_check
      _
    $region23: #{prediction_layer_forward.1} parent=1 // pred_check_branch
      %25 = sbr.rel (0) target = $region25
    $region24: #{prediction_layer_forward.1} parent=1 // pred_region
      _
    $region25: #{prediction_layer_forward.1} parent=1 // pred_fallthru
      _
    // Predicated region
    $region26: #{prediction_layer_forward.1} parent=1 // pred_check
      _
    $region27: #{prediction_layer_forward.1} parent=1 // pred_check_branch
      %27 = sbr.rel (0) target = $region29
    $region28: #{prediction_layer_forward.1} parent=1 // pred_region
      _
    $region29: #{prediction_layer_forward.1} parent=1 // pred_fallthru
      _
    // Predicated region
    $region30: #{prediction_layer_forward.1} parent=1 // pred_check
      _
    $region31: #{prediction_layer_forward.1} parent=1 // pred_check_branch
      %29 = sbr.rel (0) target = $region33
    $region32: #{prediction_layer_forward.1} parent=1 // pred_region
      _
    $region33: #{prediction_layer_forward.1} parent=1 // pred_fallthru
      _
    %v31 = vld [vmem:[%s5] sm:$0xf]
    %v32 = vld [vmem:[%s5 + $0x4] sm:$0xf]
    %v33 = vld [vmem:[%s2] sm:$0xff]
    %v34 = vld [vmem:[%s2 + $0x8] sm:$0xff]
    %v35 = vld [vmem:[%s2 + $0x10] sm:$0xff]
    %v36 = vld [vmem:[%s2 + $0x18] sm:$0xff]
    %v37 = vld [vmem:[%s6] sm:$0xff]
    %v38 = vld [vmem:[%s6 + $0x8] sm:$0xff]
    %40 = vset.pattern.permute.xlu0 0
    %41 = vperm.xlu0 %40, %v37
    %v42 = vpop.permute.xlu0 %41
    %45 = vset.pattern.permute.xlu0 0
    %46 = vperm.xlu0 %45, %v38
    %v47 = vpop.permute.xlu0 %46
    %v51 = vunpack.c.l.b16 %v31
    %v52 = vunpack.c.l.b16 %v32
    %v53 = vpack.c.b16 %v52, %v51
    %v58 = vunpack.c.l.b16 %v33
    %v59 = vunpack.c.h.b16 %v33
    %v60 = vunpack.c.l.b16 %v34
    %v61 = vunpack.c.h.b16 %v34
    %v62 = vunpack.c.l.b16 %v35
    %v63 = vunpack.c.h.b16 %v35
    %v64 = vunpack.c.l.b16 %v36
    %v65 = vunpack.c.h.b16 %v36
    %v66 = vpack.c.b16 %v60, %v58
    %v67 = vpack.c.b16 %v61, %v59
    %v68 = vpack.c.b16 %v64, %v62
    %v69 = vpack.c.b16 %v65, %v63
    %vm74 = vcmask 261120
    %v76 = vsel %vm74, %v53, 0
    %78 = vmatprep.subr.bf16.mxu0 %v67
    %79 = vmatpush1.bf16.msra.mxu0 %v66
    %80 = vmatprep.subr.bf16.mxu0 %v69
    %81 = vmatpush1.bf16.msra.mxu0 %v68
    %82 = vmatprep.subr.bf16.mxu0 0
    %83 = vmatpush1.bf16.msra.mxu0 0
    %84 = vmatprep.subr.bf16.mxu0 0
    %85 = vmatpush1.bf16.msra.mxu0 0
    %86 = vmatprep.subr.bf16.mxu0 0
    %87 = vmatpush1.bf16.msra.mxu0 0
    %88 = vmatprep.subr.bf16.mxu0 0
    %89 = vmatpush1.bf16.msra.mxu0 0
    %90 = vmatprep.subr.bf16.mxu0 0
    %91 = vmatpush1.bf16.msra.mxu0 0
    %92 = vmatprep.subr.bf16.mxu0 0
    %93 = vmatpush1.bf16.msra.mxu0 0
    %94 = vmatprep.subr.bf16.mxu0 0
    %95 = vmatpush1.bf16.msra.mxu0 0
    %96 = vmatprep.subr.bf16.mxu0 0
    %97 = vmatpush1.bf16.msra.mxu0 0
    %98 = vmatprep.subr.bf16.mxu0 0
    %99 = vmatpush1.bf16.msra.mxu0 0
    %100 = vmatprep.subr.bf16.mxu0 0
    %101 = vmatpush1.bf16.msra.mxu0 0
    %102 = vmatprep.subr.bf16.mxu0 0
    %103 = vmatpush1.bf16.msra.mxu0 0
    %104 = vmatprep.subr.bf16.mxu0 0
    %105 = vmatpush1.bf16.msra.mxu0 0
    %106 = vmatprep.subr.bf16.mxu0 0
    %107 = vmatpush1.bf16.msra.mxu0 0
    %108 = vmatprep.subr.bf16.mxu0 0
    %109 = vmatpush1.bf16.msra.mxu0 0
    %110 = vmatprep.mubr.bf16.mxu0 0
    %111 = vmatmul.mubr.bf16.gmra.mrb[0].mxu0 %v76
    %v112 = vpop.f32.mrb[0].mxu0
    %v113 = vadd.f32 %v42, %v112
    %v114 = vpop.f32.mrb[0].mxu0
    %v115 = vadd.f32 %v42, %v114
    %v116 = vpop.f32.mrb[0].mxu0
    %v117 = vadd.f32 %v47, %v116
    %v118 = vpop.f32.mrb[0].mxu0
    %v119 = vadd.f32 %v47, %v118
    %120 = vdwg.mxu0
    %vm121 = vcmp.gt.f32.partialorder %v113, 0.0
    %vm122 = vcmp.gt.f32.partialorder %v115, 0.0
    %vm123 = vcmp.gt.f32.partialorder %v117, 0.0
    %vm124 = vcmp.gt.f32.partialorder %v119, 0.0
    %v125 = vmul.f32 %v113, 0.01
    %v126 = vmul.f32 %v115, 0.01
    %v127 = vmul.f32 %v117, 0.01
    %v128 = vmul.f32 %v119, 0.01
    %v129 = vsel %vm121, %v113, %v125
    %v130 = vsel %vm122, %v115, %v126
    %v131 = vsel %vm123, %v117, %v127
    %v132 = vsel %vm124, %v119, %v128
    %133 = vset.pattern.permute.xlu0 1
    %134 = vperm.xlu0 %133, %v37
    %v135 = vpop.permute.xlu0 %134
    %137 = vset.pattern.permute.xlu0 1
    %138 = vperm.xlu0 %137, %v38
    %v139 = vpop.permute.xlu0 %138
    %v141 = vmul.f32 %v135, %v129
    %v142 = vmul.f32 %v135, %v130
    %v143 = vmul.f32 %v139, %v131
    %v144 = vmul.f32 %v139, %v132
    %v145 = vadd.f32 %v141, %v143
    %v146 = vrot.slane %v145, 4
    %v147 = vadd.f32 %v145, %v146
    %v148 = vrot.slane %v147, 2
    %v149 = vadd.f32 %v147, %v148
    %v150 = vrot.slane %v149, 1
    %v151 = vadd.f32 %v149, %v150
    %v152 = vadd.f32 %v142, %v144
    %v153 = vrot.slane %v152, 4
    %v154 = vadd.f32 %v152, %v153
    %v155 = vrot.slane %v154, 2
    %v156 = vadd.f32 %v154, %v155
    %v157 = vrot.slane %v156, 1
    %v158 = vadd.f32 %v156, %v157
    %v159 = vld [vmem:[%s0] ss:$4 sm:$0x3]
    %s160 = scalar_lea.vmem %s0, 1
    %v161 = vld [vmem:[%s160] ss:$4 sm:$0x3]
    %s162 = scalar_lea.vmem %s0, 2
    %v163 = vld [vmem:[%s162] ss:$4 sm:$0x3]
    %s164 = scalar_lea.vmem %s0, 3
    %v165 = vld [vmem:[%s164] ss:$4 sm:$0x3]
    %v166 = vld [vmem:[%s3] sm:$0xf]
    %v167 = vld [vmem:[%s4] sm:$0xf]
    %v168 = vmax.f32 %v166, %v167
    %v170 = vlaneseq
    %v171 = vshrl.u32 %v170, 7
    %v172 = vsub.s32 0, %v171
    %v173 = vrot.slane %v161, %v172
    %v174 = vlaneseq
    %v175 = vshrl.u32 %v174, 7
    %v176 = vsub.s32 1, %v175
    %v177 = vrot.slane %v161, %v176
    %v178 = vcombine.low %v173, %v177
    %v180 = vunpack.c.l.s4 1983009808
    %v181 = vunpack.c.0.s8 %v180
    %v182 = vlaneseq
    %v183 = vshrl.u32 %v182, 7
    %v184 = vsub.s32 %v181, %v183
    %v185 = vrot.slane %v178, %v184
    %v187 = vmul.f32 %v168, %v185
    %v189 = vlaneseq
    %v190 = vshrl.u32 %v189, 7
    %v191 = vsub.s32 0, %v190
    %v192 = vrot.slane %v159, %v191
    %v193 = vlaneseq
    %v194 = vshrl.u32 %v193, 7
    %v195 = vsub.s32 1, %v194
    %v196 = vrot.slane %v159, %v195
    %v201 = vunpack.c.l.s4 1983009808
    %v202 = vunpack.c.0.s8 %v201
    %v203 = vlaneseq
    %v204 = vshrl.u32 %v203, 7
    %v205 = vsub.s32 %v202, %v204
    %v206 = vrot.slane %v187, %v205
    %v207 = vcombine.high %v206, %v206
    %v210 = vsub.f32 %v192, %v206
    %v211 = vsub.f32 %v196, %v207
    %v212 = vld [vmem:[%s1] sm:$0x3]
    %v213 = vmul.f32 %v163, %v212
    %v215 = vlaneseq
    %v216 = vshrl.u32 %v215, 7
    %v217 = vsub.s32 0, %v216
    %v218 = vrot.slane %v213, %v217
    %v219 = vlaneseq
    %v220 = vshrl.u32 %v219, 7
    %v221 = vsub.s32 1, %v220
    %v222 = vrot.slane %v213, %v221
    %v223 = vcombine.low %v218, %v222
    %v225 = vunpack.c.l.s4 1983009808
    %v226 = vunpack.c.0.s8 %v225
    %v227 = vlaneseq
    %v228 = vshrl.u32 %v227, 7
    %v229 = vsub.s32 %v226, %v228
    %v230 = vrot.slane %v223, %v229
    %v232 = vmul.f32 %v166, %v230
    %v235 = vunpack.c.l.s4 1983009808
    %v236 = vunpack.c.0.s8 %v235
    %v237 = vlaneseq
    %v238 = vshrl.u32 %v237, 7
    %v239 = vsub.s32 %v236, %v238
    %v240 = vrot.slane %v232, %v239
    %v241 = vcombine.high %v240, %v240
    %v244 = vadd.f32 %v210, %v240
    %v245 = vadd.f32 %v211, %v241
    %v248 = vcombine.low %v151, %v158
    %v250 = vunpack.c.l.s4 1966171168
    %v251 = vunpack.c.0.s8 %v250
    %v252 = vlaneseq
    %v253 = vshrl.u32 %v252, 7
    %v254 = vsub.s32 %v251, %v253
    %v255 = vrot.slane %v248, %v254
    %v257 = vunpack.c.l.s4 1966171168
    %v258 = vunpack.c.0.s8 %v257
    %v259 = vlaneseq
    %v260 = vshrl.u32 %v259, 7
    %v261 = vsub.s32 %v258, %v260
    %v262 = vrot.slane %v255, %v261
    %v264 = vmul.f32 %v163, %v262
    %v265 = vadd.f32 %v264, %v165
    %v267 = vlaneseq
    %v268 = vshrl.u32 %v267, 7
    %v269 = vsub.s32 0, %v268
    %v270 = vrot.slane %v265, %v269
    %v271 = vlaneseq
    %v272 = vshrl.u32 %v271, 7
    %v273 = vsub.s32 1, %v272
    %v274 = vrot.slane %v265, %v273
    %v275 = vcombine.low %v270, %v274
    %v277 = vunpack.c.l.s4 1983009808
    %v278 = vunpack.c.0.s8 %v277
    %v279 = vlaneseq
    %v280 = vshrl.u32 %v279, 7
    %v281 = vsub.s32 %v278, %v280
    %v282 = vrot.slane %v275, %v281
    %v284 = vmul.f32 %v167, %v282
    %v287 = vunpack.c.l.s4 1983009808
    %v288 = vunpack.c.0.s8 %v287
    %v289 = vlaneseq
    %v290 = vshrl.u32 %v289, 7
    %v291 = vsub.s32 %v288, %v290
    %v292 = vrot.slane %v284, %v291
    %v293 = vcombine.high %v292, %v292
    %v296 = vadd.f32 %v244, %v292
    %v297 = vadd.f32 %v245, %v293
    %v298 = vld [vmem:[%s7] sm:$0x3]
    %300 = vset.pattern.permute.xlu0 0
    %301 = vperm.xlu0 %300, %v298
    %v302 = vpop.permute.xlu0 %301
    %v304 = vadd.f32 %v296, %v302
    %v305 = vadd.f32 %v297, %v302
    %v308 = vcombine.low %v304, %v305
    %v310 = vunpack.c.l.s4 1983009808
    %v311 = vunpack.c.0.s8 %v310
    %v312 = vlaneseq
    %v313 = vshrl.u32 %v312, 7
    %v314 = vsub.s32 %v311, %v313
    %v315 = vrot.slane %v308, %v314
    %317 = vst [vmem:[#allocation2] sm:$0xf] %v315
    // Predicated region
    $region34: #{prediction_layer_forward.1} parent=1 // pred_check
      _
    $region35: #{prediction_layer_forward.1} parent=1 // pred_check_branch
      %319 = sbr.rel (0) target = $region37
    $region36: #{prediction_layer_forward.1} parent=1 // pred_region
      %s321 = ssub.s32 64, 64
      %322 = vsyncadd [#allocation3], %s321
      %s324 = sshll.u32 [#allocation2], 4
      %s325 = int_to_ptr.vmem [resolvable:$true] %s324
      %327 = dma.vmem_to_hbm [thread:$0]  %s325, 64, %s8, [#allocation3]
    $region37: #{prediction_layer_forward.1} parent=1 // pred_fallthru
      _
    // Predicated region
    $region38: #{prediction_layer_forward.1} parent=1 // pred_check
      _
    $region39: #{prediction_layer_forward.1} parent=1 // pred_check_branch
      %329 = sbr.rel (0) target = $region41
    $region40: #{prediction_layer_forward.1} parent=1 // pred_region
      %330 = dma.done [#allocation3], 64
    $region41: #{prediction_layer_forward.1} parent=1 // pred_fallthru
      _
    %331 = vsyncpa [#allocation3], 1

</llo_original>
